<compile_context>
chip_gen: v7x
topology: tpu7x:2x2x1
jax: 0.10.0
libtpu: 0.0.40
codegen_flags: <defaults>
</compile_context>

<pallas_src>
import functools

import jax
import jax.numpy as jnp
from jax.experimental import pallas as pl
from jax.experimental.pallas import tpu as pltpu


def _fused_linear_bn_kernel(x_ref, w_ref, b_ref, o_ref):
    # x_ref: (TB, D) f32   w_ref: (D, C) bf16   b_ref: (1, C) f32   o_ref: (TB, C) out_dtype
    x = x_ref[...].astype(w_ref.dtype)   # in-kernel cast: pack on VALU, hidden under DMA
    acc = jnp.dot(x, w_ref[...], preferred_element_type=jnp.float32)
    o_ref[...] = (acc + b_ref[...]).astype(o_ref.dtype)


def prepare_feat_bottleneck_params(weight, bias, bn_gamma, bn_beta,
                                   bn_running_mean, bn_running_var,
                                   eps=1e-5, compute_dtype=jnp.bfloat16):
    """One-time parameter prep (outside the per-forward hot path).

    weight: (bottleneck_dim, feature_dim)  -- PyTorch nn.Linear convention
    bias, bn_*: (bottleneck_dim,)
    Returns (w_fused (D_pad, C) in compute_dtype, b_fused (1, C) f32), with
    D_pad = feature_dim rounded up to a multiple of 128 (zero-padded rows).
    """
    scale = bn_gamma / jnp.sqrt(bn_running_var + eps)              # (C,)
    w_fused = (weight * scale[:, None]).T.astype(compute_dtype)    # (D, C), hoisted transpose
    b_fused = ((bias - bn_running_mean) * scale + bn_beta).astype(jnp.float32)

    d = w_fused.shape[0]
    d_pad = ((d + 127) // 128) * 128
    if d_pad != d:                                                 # keep lane/MXU feed unmasked
        w_fused = jnp.pad(w_fused, ((0, d_pad - d), (0, 0)))
    return w_fused, b_fused.reshape(1, -1)


@functools.partial(jax.jit, static_argnames=("block_b", "out_dtype"))
def feat_bottleneck_forward(x, w_fused, b_fused, *, block_b=1024,
                            out_dtype=jnp.bfloat16):
    """Fused Linear + eval-mode BatchNorm1d.  x: (B, feature_dim) -> (B, bottleneck_dim)."""
    B, D = x.shape
    D_pad, C = w_fused.shape
    if D != D_pad:
        # Odd feature_dim: match the zero-padded fused weight (no-op for 512/1024/2048).
        x = jnp.pad(x, ((0, 0), (0, D_pad - D)))
        D = D_pad

    # Batch tile: as large as possible (amortizes ~0.35 us/step pipeline overhead),
    # but always >= 2 grid steps when B >= 16 so both v7x TensorCores get work.
    tb = min(B, block_b)
    if pl.cdiv(B, tb) < 2 and B >= 16:
        tb = max(8, 8 * ((B + 15) // 16))           # ~B/2, rounded up to a multiple of 8
    grid = (pl.cdiv(B, tb),)

    x_bytes = jnp.dtype(x.dtype).itemsize
    w_bytes = jnp.dtype(w_fused.dtype).itemsize
    o_bytes = jnp.dtype(out_dtype).itemsize

    # Double-buffered VMEM footprint of one grid step (+ headroom), set explicitly.
    vmem_needed = 2 * (tb * D * x_bytes + D * C * w_bytes + 8 * C * 4 + tb * C * o_bytes)
    vmem_limit = int(min(64 << 20, max(16 << 20, vmem_needed + (4 << 20))))

    cost = pl.CostEstimate(
        flops=2 * B * D * C,
        transcendentals=0,
        bytes_accessed=B * D * x_bytes + D * C * w_bytes + C * 4 + B * C * o_bytes,
    )

    return pl.pallas_call(
        _fused_linear_bn_kernel,
        out_shape=jax.ShapeDtypeStruct((B, C), out_dtype),
        grid=grid,
        in_specs=[
            pl.BlockSpec((tb, D), lambda i: (i, 0)),   # x: tiled over batch, pipelined DMA
            pl.BlockSpec((D, C), lambda i: (0, 0)),    # fused weight: VMEM-resident
            pl.BlockSpec((1, C), lambda i: (0, 0)),    # fused bias/shift: resident
        ],
        out_specs=pl.BlockSpec((tb, C), lambda i: (i, 0)),
        compiler_params=pltpu.CompilerParams(
            dimension_semantics=("parallel",),
            vmem_limit_bytes=vmem_limit,
        ),
        cost_estimate=cost,
    )(x, w_fused, b_fused)


if __name__ == "__main__":
    # Small shapes consistent with the module: feature_dim=512, bottleneck_dim=256, batch=16.
    batch, feature_dim, bottleneck_dim = 16, 512, 256
    eps = 1e-5

    key = jax.random.PRNGKey(0)
    kx, kw, kb, kg, kbt, km, kv = jax.random.split(key, 7)

    x = jax.random.normal(kx, (batch, feature_dim), dtype=jnp.float32)

    bound = 1.0 / (feature_dim ** 0.5)
    weight = jax.random.uniform(kw, (bottleneck_dim, feature_dim),
                                dtype=jnp.float32, minval=-bound, maxval=bound)
    bias = jax.random.uniform(kb, (bottleneck_dim,),
                              dtype=jnp.float32, minval=-bound, maxval=bound)
    bn_gamma = 1.0 + 0.1 * jax.random.normal(kg, (bottleneck_dim,), dtype=jnp.float32)
    bn_beta = 0.1 * jax.random.normal(kbt, (bottleneck_dim,), dtype=jnp.float32)
    bn_mean = 0.1 * jax.random.normal(km, (bottleneck_dim,), dtype=jnp.float32)
    bn_var = jax.random.uniform(kv, (bottleneck_dim,), dtype=jnp.float32,
                                minval=0.5, maxval=1.5)

    # One-time parameter prep (BN fold + weight transpose + bf16 cast + D padding).
    w_fused, b_fused = prepare_feat_bottleneck_params(
        weight, bias, bn_gamma, bn_beta, bn_mean, bn_var, eps=eps)

    y = feat_bottleneck_forward(x, w_fused, b_fused)
    y = jax.block_until_ready(y)
    assert y.shape == (batch, bottleneck_dim)
    assert y.dtype == jnp.bfloat16
    y32 = y.astype(jnp.float32)

    # Tight check: same bf16 operands, f32 accumulation, bf16-rounded output slack.
    x_b = x.astype(jnp.bfloat16).astype(jnp.float32)
    w_b = w_fused.astype(jnp.float32)
    y_tight = x_b @ w_b + b_fused
    assert jnp.allclose(y32, y_tight, atol=2e-2, rtol=2e-2)

    # Semantic check vs. the full-precision PyTorch-style forward
    # (Linear -> eval-mode BatchNorm1d); slack covers bf16 MXU + bf16 output.
    y_lin = x @ weight.T + bias
    y_ref = (y_lin - bn_mean) / jnp.sqrt(bn_var + eps) * bn_gamma + bn_beta
    assert jnp.allclose(y32, y_ref, atol=5e-2, rtol=5e-2)

    print("KERNEL_OK")
</pallas_src>

<mosaic_0001>
module attributes {stable_mosaic.version = 11 : i64} {
  func.func @_fused_linear_bn_kernel(%arg0: i32, %arg1: memref<8x512xf32, #tpu.memory_space<vmem>>, %arg2: memref<512x256xbf16, #tpu.memory_space<vmem>>, %arg3: memref<1x256xf32, #tpu.memory_space<vmem>>, %arg4: memref<8x256xbf16, #tpu.memory_space<vmem>>) attributes {dimension_semantics = [#tpu.dimension_semantics<parallel>], iteration_bounds = array<i64: 2>, scalar_prefetch = 0 : i64, scratch_operands = 0 : i64, tpu.core_type = #tpu.core_type<tc>, window_params = [{transform_indices = @transform_0, window_bounds = array<i64: 8, 512>}, {pipeline_mode = #tpu.pipeline_mode<synchronous>, transform_indices = @transform_1, window_bounds = array<i64: 512, 256>}, {pipeline_mode = #tpu.pipeline_mode<synchronous>, transform_indices = @transform_2, window_bounds = array<i64: 1, 256>}, {transform_indices = @transform_3, window_bounds = array<i64: 8, 256>}]} {
    %c0 = arith.constant 0 : index
    %c0_0 = arith.constant 0 : index
    %0 = vector.load %arg1[%c0, %c0_0] : memref<8x512xf32, #tpu.memory_space<vmem>>, vector<8x512xf32>
    %1 = arith.truncf %0 : vector<8x512xf32> to vector<8x512xbf16>
    %c0_1 = arith.constant 0 : index
    %c0_2 = arith.constant 0 : index
    %2 = vector.load %arg2[%c0_1, %c0_2] : memref<512x256xbf16, #tpu.memory_space<vmem>>, vector<512x256xbf16>
    %cst = arith.constant dense<0.000000e+00> : vector<8x256xf32>
    %3 = tpu.matmul %1, %2, %cst {dimension_numbers = #tpu.dot_dimension_numbers<[1], [0], [0], [1], [0, 0, 1, 1], [], []>} : vector<8x512xbf16>, vector<512x256xbf16>, vector<8x256xf32> -> vector<8x256xf32>
    %c0_3 = arith.constant 0 : index
    %c0_4 = arith.constant 0 : index
    %4 = vector.load %arg3[%c0_3, %c0_4] : memref<1x256xf32, #tpu.memory_space<vmem>>, vector<1x256xf32>
    %5 = vector.broadcast %4 : vector<1x256xf32> to vector<8x256xf32>
    %6 = arith.addf %3, %5 : vector<8x256xf32>
    %7 = arith.truncf %6 : vector<8x256xf32> to vector<8x256xbf16>
    %c0_5 = arith.constant 0 : index
    %c0_6 = arith.constant 0 : index
    %8 = vector.load %arg4[%c0_5, %c0_6] : memref<8x256xbf16, #tpu.memory_space<vmem>>, vector<8x256xbf16>
    tpu.vector_store %arg4[%c0_5, %c0_6], %7 {strides = array<i32>} : memref<8x256xbf16, #tpu.memory_space<vmem>>, vector<8x256xbf16>,
    return
  }
  func.func @transform_0(%arg0: i32) -> (i32, i32) {
    %c0_i32 = arith.constant 0 : i32
    %c0_i32_0 = arith.constant 0 : i32
    return %arg0, %c0_i32 : i32, i32
  }
  func.func @transform_1(%arg0: i32) -> (i32, i32) {
    %c0_i32 = arith.constant 0 : i32
    %c0_i32_0 = arith.constant 0 : i32
    %c0_i32_1 = arith.constant 0 : i32
    return %c0_i32, %c0_i32_0 : i32, i32
  }
  func.func @transform_2(%arg0: i32) -> (i32, i32) {
    %c0_i32 = arith.constant 0 : i32
    %c0_i32_0 = arith.constant 0 : i32
    %c0_i32_1 = arith.constant 0 : i32
    return %c0_i32, %c0_i32_0 : i32, i32
  }
  func.func @transform_3(%arg0: i32) -> (i32, i32) {
    %c0_i32 = arith.constant 0 : i32
    %c0_i32_0 = arith.constant 0 : i32
    return %arg0, %c0_i32 : i32, i32
  }
}

</mosaic_0001>

<llo_original>
// kernel: feat_bottleneck_forward.1
$region0: #{feat_bottleneck_forward.1}
  #allocation0 [shape = 'u32[]', space=smem, size = 0x4, offset = 0x4, fixed_abs, tag = 'smem constant byte address 0x4 - core index']
  #allocation1 [shape = 'u32[144,128]{1,0:T(1,128)}', space=vmem, size = 0x12000, scoped, tag = 'internal scratch']
  %s0 = inlined_call_operand.hbm [shape: f32[16,512], index: 0, kind: input, shape index: {}]
  %s1 = inlined_call_operand.hbm [shape: bf16[512,256], index: 1, kind: input, shape index: {}]
  %s2 = inlined_call_operand.vmem [shape: f32[1,256], index: 2, kind: input, shape index: {}]
  %s3 = inlined_call_operand.hbm [shape: bf16[16,256], index: 3, kind: output, shape index: {}]
  %s4 = sld [smem:[#allocation0]]
  $region53: #{feat_bottleneck_forward.1} parent=0
    _
  %s6 = ssub.s32 1, %s4
  %s7 = scalar_select 0, %s6, %s4
  $region1: #{feat_bottleneck_forward.1} parent=0
    #allocation2 [shape = 'u8[32768]{0}', space=vmem, size = 0x8000, scoped, tag = 'input window, operand 0']
    #allocation3 [shape = 's32[2]{0}', space=sflag, size = 0x8, scoped, tag = 'scoped memory for feat_bottleneck_forward.1']
    #allocation4 [shape = 's32[2]{0}', space=sflag, size = 0x8, scoped, tag = 'scoped memory for feat_bottleneck_forward.1']
    #allocation5 [shape = 'u8[262144]{0}', space=vmem, size = 0x40000, scoped, tag = 'input window, operand 1, single buffered']
    #allocation6 [shape = 's32[1]{0}', space=sflag, size = 0x4, scoped, tag = 'scoped memory for feat_bottleneck_forward.1']
    #allocation7 [shape = 'u8[8192]{0}', space=vmem, size = 0x2000, scoped, tag = 'output window, operand 0']
    %8 = vsyncpa [#allocation3], 0
    %s9 = scalar_lea.sflag [#allocation3], 1
    %10 = vsyncpa %s9, 0
    %11 = vsyncpa [#allocation6], 0
    %12 = vsyncpa [#allocation4], 0
    %s13 = scalar_lea.sflag [#allocation4], 1
    %14 = vsyncpa %s13, 0
    loop: start=0, step=1, limit=4
    $region2: #{feat_bottleneck_forward.1} parent=1 // loop_pre_header
      _
    $region3: #{feat_bottleneck_forward.1} parent=1 // loop_header
      %s16 = sphi 0, %s20
      %p17 = scmp.ge.s32.totalorder %s16, 4
      %s26 = sphi 0, %s28
      %s29 = sphi 0, %s26
      %s30 = sphi 0, %s29
      %s46 = sphi 0, %s30
      %s50 = sphi 0, %s50
      %s52 = sphi 0, %s50
      %s53 = sphi 0, %s52
      %s67 = sphi 0, %s53
      %s71 = sphi 0, %s71
      %s73 = sphi 0, %s71
      %s74 = sphi 0, %s73
      %s88 = sphi 0, %s74
      %s94 = sphi 0, %s96
      %s97 = sphi 0, %s94
      %s98 = sphi 0, %s97
      %s114 = sphi 0, %s98
    $region4: #{feat_bottleneck_forward.1} parent=1 // loop_header_branch
      %19 = sbr.rel (%p17) target = $region8
    $region5: #{feat_bottleneck_forward.1} parent=1 // loop_body
      %s21 = ssub.s32 %s16, 1
      %s22 = ssub.s32 %s16, 2
      %s23 = sadd.s32 %s16, 1
      %s24 = ssub.s32 %s16, %s23
      %p25 = scmp.eq.s32.totalorder %s24, 0
      %s27 = sadd.s32 %s26, 1
      %s28 = scalar_select %p25, %s26, %s27
      %p31 = pneg %p25
      %p32 = scmp.eq.s32.totalorder %s16, 1
      %p33 = por %p31, %p32
      %p34 = scmp.ne.s32.totalorder %s26, %s29
      %p35 = scmp.eq.s32.totalorder %s16, 0
      %p36 = por %p34, %p35
      %p37 = scmp.ne.s32.totalorder %s26, %s29
      %p38 = scmp.eq.s32.totalorder %s21, 1
      %p39 = por %p37, %p38
      %p40 = scmp.ne.s32.totalorder %s29, %s30
      %p41 = scmp.eq.s32.totalorder %s21, 0
      %p42 = por %p40, %p41
      %p43 = scmp.ne.s32.totalorder %s29, %s30
      %p44 = scmp.eq.s32.totalorder %s22, 1
      %p45 = por %p43, %p44
      %p47 = scmp.ne.s32.totalorder %s30, %s46
      %p48 = scmp.eq.s32.totalorder %s22, 0
      %p49 = por %p47, %p48
      %s51 = sadd.s32 %s50, 1
      %p54 = scmp.eq.s32.totalorder %s16, 1
      %p55 = scmp.ne.s32.totalorder %s50, %s52
      %p56 = scmp.eq.s32.totalorder %s16, 0
      %p57 = por %p55, %p56
      %p58 = scmp.ne.s32.totalorder %s50, %s52
      %p59 = scmp.eq.s32.totalorder %s21, 1
      %p60 = por %p58, %p59
      %p61 = scmp.ne.s32.totalorder %s52, %s53
      %p62 = scmp.eq.s32.totalorder %s21, 0
      %p63 = por %p61, %p62
      %p64 = scmp.ne.s32.totalorder %s52, %s53
      %p65 = scmp.eq.s32.totalorder %s22, 1
      %p66 = por %p64, %p65
      %p68 = scmp.ne.s32.totalorder %s53, %s67
      %p69 = scmp.eq.s32.totalorder %s22, 0
      %p70 = por %p68, %p69
      %s72 = sadd.s32 %s71, 1
      %p75 = scmp.eq.s32.totalorder %s16, 1
      %p76 = scmp.ne.s32.totalorder %s71, %s73
      %p77 = scmp.eq.s32.totalorder %s16, 0
      %p78 = por %p76, %p77
      %p79 = scmp.ne.s32.totalorder %s71, %s73
      %p80 = scmp.eq.s32.totalorder %s21, 1
      %p81 = por %p79, %p80
      %p82 = scmp.ne.s32.totalorder %s73, %s74
      %p83 = scmp.eq.s32.totalorder %s21, 0
      %p84 = por %p82, %p83
      %p85 = scmp.ne.s32.totalorder %s73, %s74
      %p86 = scmp.eq.s32.totalorder %s22, 1
      %p87 = por %p85, %p86
      %p89 = scmp.ne.s32.totalorder %s74, %s88
      %p90 = scmp.eq.s32.totalorder %s22, 0
      %p91 = por %p89, %p90
      %s92 = ssub.s32 %s16, %s23
      %p93 = scmp.eq.s32.totalorder %s92, 0
      %s95 = sadd.s32 %s94, 1
      %s96 = scalar_select %p93, %s94, %s95
      %p99 = pneg %p93
      %p100 = scmp.eq.s32.totalorder %s16, 1
      %p101 = por %p99, %p100
      %p102 = scmp.ne.s32.totalorder %s94, %s97
      %p103 = scmp.eq.s32.totalorder %s16, 0
      %p104 = por %p102, %p103
      %p105 = scmp.ne.s32.totalorder %s94, %s97
      %p106 = scmp.eq.s32.totalorder %s21, 1
      %p107 = por %p105, %p106
      %p108 = scmp.ne.s32.totalorder %s97, %s98
      %p109 = scmp.eq.s32.totalorder %s21, 0
      %p110 = por %p108, %p109
      %p111 = scmp.ne.s32.totalorder %s97, %s98
      %p112 = scmp.eq.s32.totalorder %s22, 1
      %p113 = por %p111, %p112
      %p115 = scmp.ne.s32.totalorder %s98, %s114
      %p116 = scmp.eq.s32.totalorder %s22, 0
      %p117 = por %p115, %p116
      %p118 = scmp.le.s32.totalorder 1, %s16
      %p119 = scmp.lt.s32.totalorder %s16, 3
      %p120 = pnand %p118, %p119
      %p121 = pneg %p120
      // Predicated region
      $region9: #{feat_bottleneck_forward.1} parent=5 // pred_check
        _
      $region10: #{feat_bottleneck_forward.1} parent=5 // pred_check_branch
        %123 = sbr.rel (%p120) target = $region12
      $region11: #{feat_bottleneck_forward.1} parent=5 // pred_region
        %s124 = ssub.s32 %s16, 1
        // Predicated region
        $region13: #{feat_bottleneck_forward.1} parent=11 // pred_check
          %p125 = pneg %p63
        $region14: #{feat_bottleneck_forward.1} parent=11 // pred_check_branch
          %127 = sbr.rel (%p125) target = $region16
        $region15: #{feat_bottleneck_forward.1} parent=11 // pred_region
          %s129 = ssub.s32 8192, 8192
          %130 = vsyncadd [#allocation6], %s129
          %s131 = sshll.u32 [#allocation5], 4
          %s132 = int_to_ptr.vmem [resolvable:$true] %s131
          %137 = dma.hbm_to_vmem [thread:$0]  %s1, 8192, %s132, [#allocation6], 128, 128, 8
        $region16: #{feat_bottleneck_forward.1} parent=11 // pred_fallthru
          _
        // Predicated region
        $region17: #{feat_bottleneck_forward.1} parent=11 // pred_check
          %p138 = pneg %p84
        $region18: #{feat_bottleneck_forward.1} parent=11 // pred_check_branch
          %140 = sbr.rel (%p138) target = $region20
        $region19: #{feat_bottleneck_forward.1} parent=11 // pred_region
          _
        $region20: #{feat_bottleneck_forward.1} parent=11 // pred_fallthru
          _
      $region12: #{feat_bottleneck_forward.1} parent=5 // pred_fallthru
        _
      %p141 = scmp.lt.s32.totalorder %s16, 2
      // Predicated region
      $region21: #{feat_bottleneck_forward.1} parent=5 // pred_check
        %p142 = pneg %p141
      $region22: #{feat_bottleneck_forward.1} parent=5 // pred_check_branch
        %144 = sbr.rel (%p142) target = $region24
      $region23: #{feat_bottleneck_forward.1} parent=5 // pred_region
        // Predicated region
        $region25: #{feat_bottleneck_forward.1} parent=23 // pred_check
          %p145 = pneg %p36
        $region26: #{feat_bottleneck_forward.1} parent=23 // pred_check_branch
          %147 = sbr.rel (%p145) target = $region28
        $region27: #{feat_bottleneck_forward.1} parent=23 // pred_region
          %s148 = sand.u32 %s26, 1
          %s149 = scalar_lea.sflag [#allocation3], %s148
          %s150 = sand.u32 %s26, 1
          %s151 = smul.addr %s150, 32
          %s152 = scalar_lea.vmem [#allocation2], %s151
          %s154 = ssub.s32 512, 512
          %155 = vsyncadd %s149, %s154
          %s156 = smul.addr %s16, 4
          %s157 = smul.addr %s156, 128
          %s158 = scalar_lea.hbm %s0, %s157
          %s160 = sshll.u32 %s152, 4
          %s161 = int_to_ptr.vmem [resolvable:$true] %s160
          %163 = dma.hbm_to_vmem [thread:$0]  %s158, 512, %s161, %s149
        $region28: #{feat_bottleneck_forward.1} parent=23 // pred_fallthru
          _
      $region24: #{feat_bottleneck_forward.1} parent=5 // pred_fallthru
        _
      %p164 = scmp.le.s32.totalorder 1, %s16
      %p165 = scmp.lt.s32.totalorder %s16, 3
      %p166 = pnand %p164, %p165
      %p167 = pneg %p166
      // Predicated region
      $region29: #{feat_bottleneck_forward.1} parent=5 // pred_check
        _
      $region30: #{feat_bottleneck_forward.1} parent=5 // pred_check_branch
        %169 = sbr.rel (%p166) target = $region32
      $region31: #{feat_bottleneck_forward.1} parent=5 // pred_region
        %s170 = ssub.s32 %s16, 1
        %s171 = sand.u32 %s29, 1
        %s172 = scalar_lea.sflag [#allocation3], %s171
        %s173 = sand.u32 %s29, 1
        %s174 = smul.addr %s173, 32
        %s175 = scalar_lea.vmem [#allocation2], %s174
        // Predicated region
        $region33: #{feat_bottleneck_forward.1} parent=31 // pred_check
          %p176 = pneg %p42
        $region34: #{feat_bottleneck_forward.1} parent=31 // pred_check_branch
          %178 = sbr.rel (%p176) target = $region36
        $region35: #{feat_bottleneck_forward.1} parent=31 // pred_region
          %179 = dma.done %s172, 512
        $region36: #{feat_bottleneck_forward.1} parent=31 // pred_fallthru
          _
        // Predicated region
        $region37: #{feat_bottleneck_forward.1} parent=31 // pred_check
          %p180 = pneg %p63
        $region38: #{feat_bottleneck_forward.1} parent=31 // pred_check_branch
          %182 = sbr.rel (%p180) target = $region40
        $region39: #{feat_bottleneck_forward.1} parent=31 // pred_region
          %183 = dma.done [#allocation6], 8192
        $region40: #{feat_bottleneck_forward.1} parent=31 // pred_fallthru
          _
        %s184 = sand.u32 %s29, 1
        %s185 = scalar_lea.sflag [#allocation3], %s184
        %s186 = sand.u32 %s29, 1
        %s187 = smul.addr %s186, 32
        %s188 = scalar_lea.vmem [#allocation2], %s187
        %p189 = pneg %p42
        %p190 = pneg %p39
        %p191 = pneg %p63
        %p192 = pneg %p60
        %p193 = pneg %p84
        %p194 = pneg %p81
        %p195 = pneg %p110
        %p196 = pneg %p107
        %s197 = sand.u32 %s97, 1
        %s198 = scalar_lea.sflag [#allocation4], %s197
        %s199 = sand.u32 %s97, 1
        %s200 = smul.addr %s199, 8
        %s201 = scalar_lea.vmem [#allocation7], %s200
        %v202 = vld [vmem:[%s175] sm:$0xff]
        %v203 = vld [vmem:[%s175 + $0x8] sm:$0xff]
        %v204 = vld [vmem:[%s175 + $0x10] sm:$0xff]
        %v205 = vld [vmem:[%s175 + $0x18] sm:$0xff]
        %v206 = vpack.c.bf16 %v202, %v202
        %v207 = vpack.c.bf16 %v203, %v203
        %v208 = vpack.c.bf16 %v204, %v204
        %v209 = vpack.c.bf16 %v205, %v205
        %v210 = vld [vmem:[#allocation5] sm:$0xff]
        %v211 = vld [vmem:[#allocation5 + $0x8] sm:$0xff]
        %v212 = vld [vmem:[#allocation5 + $0x10] sm:$0xff]
        %v213 = vld [vmem:[#allocation5 + $0x18] sm:$0xff]
        %v214 = vld [vmem:[#allocation5 + $0x20] sm:$0xff]
        %v215 = vld [vmem:[#allocation5 + $0x28] sm:$0xff]
        %v216 = vld [vmem:[#allocation5 + $0x30] sm:$0xff]
        %v217 = vld [vmem:[#allocation5 + $0x38] sm:$0xff]
        %v218 = vld [vmem:[#allocation5 + $0x40] sm:$0xff]
        %v219 = vld [vmem:[#allocation5 + $0x48] sm:$0xff]
        %v220 = vld [vmem:[#allocation5 + $0x50] sm:$0xff]
        %v221 = vld [vmem:[#allocation5 + $0x58] sm:$0xff]
        %v222 = vld [vmem:[#allocation5 + $0x60] sm:$0xff]
        %v223 = vld [vmem:[#allocation5 + $0x68] sm:$0xff]
        %v224 = vld [vmem:[#allocation5 + $0x70] sm:$0xff]
        %v225 = vld [vmem:[#allocation5 + $0x78] sm:$0xff]
        %v226 = vld [vmem:[#allocation5 + $0x80] sm:$0xff]
        %v227 = vld [vmem:[#allocation5 + $0x88] sm:$0xff]
        %v228 = vld [vmem:[#allocation5 + $0x90] sm:$0xff]
        %v229 = vld [vmem:[#allocation5 + $0x98] sm:$0xff]
        %v230 = vld [vmem:[#allocation5 + $0xa0] sm:$0xff]
        %v231 = vld [vmem:[#allocation5 + $0xa8] sm:$0xff]
        %v232 = vld [vmem:[#allocation5 + $0xb0] sm:$0xff]
        %v233 = vld [vmem:[#allocation5 + $0xb8] sm:$0xff]
        %v234 = vld [vmem:[#allocation5 + $0xc0] sm:$0xff]
        %v235 = vld [vmem:[#allocation5 + $0xc8] sm:$0xff]
        %v236 = vld [vmem:[#allocation5 + $0xd0] sm:$0xff]
        %v237 = vld [vmem:[#allocation5 + $0xd8] sm:$0xff]
        %v238 = vld [vmem:[#allocation5 + $0xe0] sm:$0xff]
        %v239 = vld [vmem:[#allocation5 + $0xe8] sm:$0xff]
        %v240 = vld [vmem:[#allocation5 + $0xf0] sm:$0xff]
        %v241 = vld [vmem:[#allocation5 + $0xf8] sm:$0xff]
        %v242 = vld [vmem:[#allocation5 + $0x100] sm:$0xff]
        %v243 = vld [vmem:[#allocation5 + $0x108] sm:$0xff]
        %v244 = vld [vmem:[#allocation5 + $0x110] sm:$0xff]
        %v245 = vld [vmem:[#allocation5 + $0x118] sm:$0xff]
        %v246 = vld [vmem:[#allocation5 + $0x120] sm:$0xff]
        %v247 = vld [vmem:[#allocation5 + $0x128] sm:$0xff]
        %v248 = vld [vmem:[#allocation5 + $0x130] sm:$0xff]
        %v249 = vld [vmem:[#allocation5 + $0x138] sm:$0xff]
        %v250 = vld [vmem:[#allocation5 + $0x140] sm:$0xff]
        %v251 = vld [vmem:[#allocation5 + $0x148] sm:$0xff]
        %v252 = vld [vmem:[#allocation5 + $0x150] sm:$0xff]
        %v253 = vld [vmem:[#allocation5 + $0x158] sm:$0xff]
        %v254 = vld [vmem:[#allocation5 + $0x160] sm:$0xff]
        %v255 = vld [vmem:[#allocation5 + $0x168] sm:$0xff]
        %v256 = vld [vmem:[#allocation5 + $0x170] sm:$0xff]
        %v257 = vld [vmem:[#allocation5 + $0x178] sm:$0xff]
        %v258 = vld [vmem:[#allocation5 + $0x180] sm:$0xff]
        %v259 = vld [vmem:[#allocation5 + $0x188] sm:$0xff]
        %v260 = vld [vmem:[#allocation5 + $0x190] sm:$0xff]
        %v261 = vld [vmem:[#allocation5 + $0x198] sm:$0xff]
        %v262 = vld [vmem:[#allocation5 + $0x1a0] sm:$0xff]
        %v263 = vld [vmem:[#allocation5 + $0x1a8] sm:$0xff]
        %v264 = vld [vmem:[#allocation5 + $0x1b0] sm:$0xff]
        %v265 = vld [vmem:[#allocation5 + $0x1b8] sm:$0xff]
        %v266 = vld [vmem:[#allocation5 + $0x1c0] sm:$0xff]
        %v267 = vld [vmem:[#allocation5 + $0x1c8] sm:$0xff]
        %v268 = vld [vmem:[#allocation5 + $0x1d0] sm:$0xff]
        %v269 = vld [vmem:[#allocation5 + $0x1d8] sm:$0xff]
        %v270 = vld [vmem:[#allocation5 + $0x1e0] sm:$0xff]
        %v271 = vld [vmem:[#allocation5 + $0x1e8] sm:$0xff]
        %v272 = vld [vmem:[#allocation5 + $0x1f0] sm:$0xff]
        %v273 = vld [vmem:[#allocation5 + $0x1f8] sm:$0xff]
        %v274 = vld [vmem:[%s2] sm:$0x3]
        %v276 = vlaneseq
        %v277 = vshrl.u32 %v276, 7
        %v278 = vsub.s32 0, %v277
        %v279 = vrot.slane %v274, %v278
        %v280 = vlaneseq
        %v281 = vshrl.u32 %v280, 7
        %v282 = vsub.s32 1, %v281
        %v283 = vrot.slane %v274, %v282
        %v350 = vunpack.c.l.b16 %v210
        %v351 = vunpack.c.h.b16 %v210
        %v352 = vunpack.c.l.b16 %v211
        %v353 = vunpack.c.h.b16 %v211
        %v354 = vunpack.c.l.b16 %v212
        %v355 = vunpack.c.h.b16 %v212
        %v356 = vunpack.c.l.b16 %v213
        %v357 = vunpack.c.h.b16 %v213
        %v358 = vunpack.c.l.b16 %v214
        %v359 = vunpack.c.h.b16 %v214
        %v360 = vunpack.c.l.b16 %v215
        %v361 = vunpack.c.h.b16 %v215
        %v362 = vunpack.c.l.b16 %v216
        %v363 = vunpack.c.h.b16 %v216
        %v364 = vunpack.c.l.b16 %v217
        %v365 = vunpack.c.h.b16 %v217
        %v366 = vunpack.c.l.b16 %v218
        %v367 = vunpack.c.h.b16 %v218
        %v368 = vunpack.c.l.b16 %v219
        %v369 = vunpack.c.h.b16 %v219
        %v370 = vunpack.c.l.b16 %v220
        %v371 = vunpack.c.h.b16 %v220
        %v372 = vunpack.c.l.b16 %v221
        %v373 = vunpack.c.h.b16 %v221
        %v374 = vunpack.c.l.b16 %v222
        %v375 = vunpack.c.h.b16 %v222
        %v376 = vunpack.c.l.b16 %v223
        %v377 = vunpack.c.h.b16 %v223
        %v378 = vunpack.c.l.b16 %v224
        %v379 = vunpack.c.h.b16 %v224
        %v380 = vunpack.c.l.b16 %v225
        %v381 = vunpack.c.h.b16 %v225
        %v382 = vunpack.c.l.b16 %v226
        %v383 = vunpack.c.h.b16 %v226
        %v384 = vunpack.c.l.b16 %v227
        %v385 = vunpack.c.h.b16 %v227
        %v386 = vunpack.c.l.b16 %v228
        %v387 = vunpack.c.h.b16 %v228
        %v388 = vunpack.c.l.b16 %v229
        %v389 = vunpack.c.h.b16 %v229
        %v390 = vunpack.c.l.b16 %v230
        %v391 = vunpack.c.h.b16 %v230
        %v392 = vunpack.c.l.b16 %v231
        %v393 = vunpack.c.h.b16 %v231
        %v394 = vunpack.c.l.b16 %v232
        %v395 = vunpack.c.h.b16 %v232
        %v396 = vunpack.c.l.b16 %v233
        %v397 = vunpack.c.h.b16 %v233
        %v398 = vunpack.c.l.b16 %v234
        %v399 = vunpack.c.h.b16 %v234
        %v400 = vunpack.c.l.b16 %v235
        %v401 = vunpack.c.h.b16 %v235
        %v402 = vunpack.c.l.b16 %v236
        %v403 = vunpack.c.h.b16 %v236
        %v404 = vunpack.c.l.b16 %v237
        %v405 = vunpack.c.h.b16 %v237
        %v406 = vunpack.c.l.b16 %v238
        %v407 = vunpack.c.h.b16 %v238
        %v408 = vunpack.c.l.b16 %v239
        %v409 = vunpack.c.h.b16 %v239
        %v410 = vunpack.c.l.b16 %v240
        %v411 = vunpack.c.h.b16 %v240
        %v412 = vunpack.c.l.b16 %v241
        %v413 = vunpack.c.h.b16 %v241
        %v414 = vunpack.c.l.b16 %v242
        %v415 = vunpack.c.h.b16 %v242
        %v416 = vunpack.c.l.b16 %v243
        %v417 = vunpack.c.h.b16 %v243
        %v418 = vunpack.c.l.b16 %v244
        %v419 = vunpack.c.h.b16 %v244
        %v420 = vunpack.c.l.b16 %v245
        %v421 = vunpack.c.h.b16 %v245
        %v422 = vunpack.c.l.b16 %v246
        %v423 = vunpack.c.h.b16 %v246
        %v424 = vunpack.c.l.b16 %v247
        %v425 = vunpack.c.h.b16 %v247
        %v426 = vunpack.c.l.b16 %v248
        %v427 = vunpack.c.h.b16 %v248
        %v428 = vunpack.c.l.b16 %v249
        %v429 = vunpack.c.h.b16 %v249
        %v430 = vunpack.c.l.b16 %v250
        %v431 = vunpack.c.h.b16 %v250
        %v432 = vunpack.c.l.b16 %v251
        %v433 = vunpack.c.h.b16 %v251
        %v434 = vunpack.c.l.b16 %v252
        %v435 = vunpack.c.h.b16 %v252
        %v436 = vunpack.c.l.b16 %v253
        %v437 = vunpack.c.h.b16 %v253
        %v438 = vunpack.c.l.b16 %v254
        %v439 = vunpack.c.h.b16 %v254
        %v440 = vunpack.c.l.b16 %v255
        %v441 = vunpack.c.h.b16 %v255
        %v442 = vunpack.c.l.b16 %v256
        %v443 = vunpack.c.h.b16 %v256
        %v444 = vunpack.c.l.b16 %v257
        %v445 = vunpack.c.h.b16 %v257
        %v446 = vunpack.c.l.b16 %v258
        %v447 = vunpack.c.h.b16 %v258
        %v448 = vunpack.c.l.b16 %v259
        %v449 = vunpack.c.h.b16 %v259
        %v450 = vunpack.c.l.b16 %v260
        %v451 = vunpack.c.h.b16 %v260
        %v452 = vunpack.c.l.b16 %v261
        %v453 = vunpack.c.h.b16 %v261
        %v454 = vunpack.c.l.b16 %v262
        %v455 = vunpack.c.h.b16 %v262
        %v456 = vunpack.c.l.b16 %v263
        %v457 = vunpack.c.h.b16 %v263
        %v458 = vunpack.c.l.b16 %v264
        %v459 = vunpack.c.h.b16 %v264
        %v460 = vunpack.c.l.b16 %v265
        %v461 = vunpack.c.h.b16 %v265
        %v462 = vunpack.c.l.b16 %v266
        %v463 = vunpack.c.h.b16 %v266
        %v464 = vunpack.c.l.b16 %v267
        %v465 = vunpack.c.h.b16 %v267
        %v466 = vunpack.c.l.b16 %v268
        %v467 = vunpack.c.h.b16 %v268
        %v468 = vunpack.c.l.b16 %v269
        %v469 = vunpack.c.h.b16 %v269
        %v470 = vunpack.c.l.b16 %v270
        %v471 = vunpack.c.h.b16 %v270
        %v472 = vunpack.c.l.b16 %v271
        %v473 = vunpack.c.h.b16 %v271
        %v474 = vunpack.c.l.b16 %v272
        %v475 = vunpack.c.h.b16 %v272
        %v476 = vunpack.c.l.b16 %v273
        %v477 = vunpack.c.h.b16 %v273
        %v478 = vpack.c.b16 %v352, %v350
        %v479 = vpack.c.b16 %v353, %v351
        %v480 = vpack.c.b16 %v356, %v354
        %v481 = vpack.c.b16 %v357, %v355
        %v482 = vpack.c.b16 %v360, %v358
        %v483 = vpack.c.b16 %v361, %v359
        %v484 = vpack.c.b16 %v364, %v362
        %v485 = vpack.c.b16 %v365, %v363
        %v486 = vpack.c.b16 %v368, %v366
        %v487 = vpack.c.b16 %v369, %v367
        %v488 = vpack.c.b16 %v372, %v370
        %v489 = vpack.c.b16 %v373, %v371
        %v490 = vpack.c.b16 %v376, %v374
        %v491 = vpack.c.b16 %v377, %v375
        %v492 = vpack.c.b16 %v380, %v378
        %v493 = vpack.c.b16 %v381, %v379
        %v494 = vpack.c.b16 %v384, %v382
        %v495 = vpack.c.b16 %v385, %v383
        %v496 = vpack.c.b16 %v388, %v386
        %v497 = vpack.c.b16 %v389, %v387
        %v498 = vpack.c.b16 %v392, %v390
        %v499 = vpack.c.b16 %v393, %v391
        %v500 = vpack.c.b16 %v396, %v394
        %v501 = vpack.c.b16 %v397, %v395
        %v502 = vpack.c.b16 %v400, %v398
        %v503 = vpack.c.b16 %v401, %v399
        %v504 = vpack.c.b16 %v404, %v402
        %v505 = vpack.c.b16 %v405, %v403
        %v506 = vpack.c.b16 %v408, %v406
        %v507 = vpack.c.b16 %v409, %v407
        %v508 = vpack.c.b16 %v412, %v410
        %v509 = vpack.c.b16 %v413, %v411
        %v510 = vpack.c.b16 %v416, %v414
        %v511 = vpack.c.b16 %v417, %v415
        %v512 = vpack.c.b16 %v420, %v418
        %v513 = vpack.c.b16 %v421, %v419
        %v514 = vpack.c.b16 %v424, %v422
        %v515 = vpack.c.b16 %v425, %v423
        %v516 = vpack.c.b16 %v428, %v426
        %v517 = vpack.c.b16 %v429, %v427
        %v518 = vpack.c.b16 %v432, %v430
        %v519 = vpack.c.b16 %v433, %v431
        %v520 = vpack.c.b16 %v436, %v434
        %v521 = vpack.c.b16 %v437, %v435
        %v522 = vpack.c.b16 %v440, %v438
        %v523 = vpack.c.b16 %v441, %v439
        %v524 = vpack.c.b16 %v444, %v442
        %v525 = vpack.c.b16 %v445, %v443
        %v526 = vpack.c.b16 %v448, %v446
        %v527 = vpack.c.b16 %v449, %v447
        %v528 = vpack.c.b16 %v452, %v450
        %v529 = vpack.c.b16 %v453, %v451
        %v530 = vpack.c.b16 %v456, %v454
        %v531 = vpack.c.b16 %v457, %v455
        %v532 = vpack.c.b16 %v460, %v458
        %v533 = vpack.c.b16 %v461, %v459
        %v534 = vpack.c.b16 %v464, %v462
        %v535 = vpack.c.b16 %v465, %v463
        %v536 = vpack.c.b16 %v468, %v466
        %v537 = vpack.c.b16 %v469, %v467
        %v538 = vpack.c.b16 %v472, %v470
        %v539 = vpack.c.b16 %v473, %v471
        %v540 = vpack.c.b16 %v476, %v474
        %v541 = vpack.c.b16 %v477, %v475
        %606 = vmatprep.subr.bf16.mxu0 %v479
        %607 = vmatpush1.bf16.msra.mxu0 %v478
        %608 = vmatprep.subr.bf16.mxu0 %v481
        %609 = vmatpush1.bf16.msra.mxu0 %v480
        %610 = vmatprep.subr.bf16.mxu0 %v483
        %611 = vmatpush1.bf16.msra.mxu0 %v482
        %612 = vmatprep.subr.bf16.mxu0 %v485
        %613 = vmatpush1.bf16.msra.mxu0 %v484
        %614 = vmatprep.subr.bf16.mxu0 %v487
        %615 = vmatpush1.bf16.msra.mxu0 %v486
        %616 = vmatprep.subr.bf16.mxu0 %v489
        %617 = vmatpush1.bf16.msra.mxu0 %v488
        %618 = vmatprep.subr.bf16.mxu0 %v491
        %619 = vmatpush1.bf16.msra.mxu0 %v490
        %620 = vmatprep.subr.bf16.mxu0 %v493
        %621 = vmatpush1.bf16.msra.mxu0 %v492
        %622 = vmatprep.subr.bf16.mxu0 %v495
        %623 = vmatpush1.bf16.msra.mxu0 %v494
        %624 = vmatprep.subr.bf16.mxu0 %v497
        %625 = vmatpush1.bf16.msra.mxu0 %v496
        %626 = vmatprep.subr.bf16.mxu0 %v499
        %627 = vmatpush1.bf16.msra.mxu0 %v498
        %628 = vmatprep.subr.bf16.mxu0 %v501
        %629 = vmatpush1.bf16.msra.mxu0 %v500
        %630 = vmatprep.subr.bf16.mxu0 %v503
        %631 = vmatpush1.bf16.msra.mxu0 %v502
        %632 = vmatprep.subr.bf16.mxu0 %v505
        %633 = vmatpush1.bf16.msra.mxu0 %v504
        %634 = vmatprep.subr.bf16.mxu0 %v507
        %635 = vmatpush1.bf16.msra.mxu0 %v506
        %636 = vmatprep.subr.bf16.mxu0 %v509
        %637 = vmatpush1.bf16.msra.mxu0 %v508
        %638 = vmatprep.mubr.bf16.mxu0 %v207
        %639 = vmatmul.mubr.bf16.gmra.mrb[0].mxu0 %v206
        %v640 = vpop.f32.mrb[0].mxu0
        %v641 = vadd.f32 %v279, %v640
        %v642 = vpop.f32.mrb[0].mxu0
        %v643 = vadd.f32 %v283, %v642
        %v644 = vpop.f32.mrb[0].mxu0
        %v645 = vpop.f32.mrb[0].mxu0
        %646 = vdwg.mxu0
        %647 = vmatprep.subr.bf16.mxu0 %v511
        %648 = vmatpush1.bf16.msra.mxu0 %v510
        %649 = vmatprep.subr.bf16.mxu0 %v513
        %650 = vmatpush1.bf16.msra.mxu0 %v512
        %651 = vmatprep.subr.bf16.mxu0 %v515
        %652 = vmatpush1.bf16.msra.mxu0 %v514
        %653 = vmatprep.subr.bf16.mxu0 %v517
        %654 = vmatpush1.bf16.msra.mxu0 %v516
        %655 = vmatprep.subr.bf16.mxu0 %v519
        %656 = vmatpush1.bf16.msra.mxu0 %v518
        %657 = vmatprep.subr.bf16.mxu0 %v521
        %658 = vmatpush1.bf16.msra.mxu0 %v520
        %659 = vmatprep.subr.bf16.mxu0 %v523
        %660 = vmatpush1.bf16.msra.mxu0 %v522
        %661 = vmatprep.subr.bf16.mxu0 %v525
        %662 = vmatpush1.bf16.msra.mxu0 %v524
        %663 = vmatprep.subr.bf16.mxu0 %v527
        %664 = vmatpush1.bf16.msra.mxu0 %v526
        %665 = vmatprep.subr.bf16.mxu0 %v529
        %666 = vmatpush1.bf16.msra.mxu0 %v528
        %667 = vmatprep.subr.bf16.mxu0 %v531
        %668 = vmatpush1.bf16.msra.mxu0 %v530
        %669 = vmatprep.subr.bf16.mxu0 %v533
        %670 = vmatpush1.bf16.msra.mxu0 %v532
        %671 = vmatprep.subr.bf16.mxu0 %v535
        %672 = vmatpush1.bf16.msra.mxu0 %v534
        %673 = vmatprep.subr.bf16.mxu0 %v537
        %674 = vmatpush1.bf16.msra.mxu0 %v536
        %675 = vmatprep.subr.bf16.mxu0 %v539
        %676 = vmatpush1.bf16.msra.mxu0 %v538
        %677 = vmatprep.subr.bf16.mxu0 %v541
        %678 = vmatpush1.bf16.msra.mxu0 %v540
        %679 = vmatprep.mubr.bf16.mxu0 %v209
        %680 = vmatmul.mubr.bf16.gmra.mrb[0].mxu0 %v208
        %v681 = vpop.f32.mrb[0].mxu0
        %v682 = vadd.f32 %v641, %v681
        %v683 = vpop.f32.mrb[0].mxu0
        %v684 = vadd.f32 %v643, %v683
        %v685 = vpop.f32.mrb[0].mxu0
        %v686 = vpop.f32.mrb[0].mxu0
        %687 = vdwg.mxu0
        %v688 = vpack.c.bf16 %v682, %v682
        %v689 = vpack.c.bf16 %v684, %v684
        %v692 = vunpack.c.l.b16 %v688
        %v693 = vunpack.c.l.b16 %v689
        %v694 = vpack.c.b16 %v693, %v692
        %696 = vst [vmem:[%s201] sm:$0xff] %v694
        %s697 = sand.u32 %s97, 1
        %s698 = scalar_lea.sflag [#allocation4], %s697
        %s699 = sand.u32 %s97, 1
        %s700 = smul.addr %s699, 8
        %s701 = scalar_lea.vmem [#allocation7], %s700
        // Predicated region
        $region41: #{feat_bottleneck_forward.1} parent=31 // pred_check
          %p702 = pneg %p107
        $region42: #{feat_bottleneck_forward.1} parent=31 // pred_check_branch
          %704 = sbr.rel (%p702) target = $region44
        $region43: #{feat_bottleneck_forward.1} parent=31 // pred_region
          %s706 = ssub.s32 128, 128
          %707 = vsyncadd %s698, %s706
          %s708 = smul.addr %s21, 2
          %s709 = smul.addr %s708, 64
          %s710 = scalar_lea.hbm %s3, %s709
          %s712 = sshll.u32 %s701, 4
          %s713 = int_to_ptr.vmem [resolvable:$true] %s712
          %715 = dma.vmem_to_hbm [thread:$0]  %s713, 128, %s710, %s698
        $region44: #{feat_bottleneck_forward.1} parent=31 // pred_fallthru
          _
      $region32: #{feat_bottleneck_forward.1} parent=5 // pred_fallthru
        _
      %p716 = scmp.le.s32.totalorder 2, %s16
      // Predicated region
      $region45: #{feat_bottleneck_forward.1} parent=5 // pred_check
        %p717 = pneg %p716
      $region46: #{feat_bottleneck_forward.1} parent=5 // pred_check_branch
        %719 = sbr.rel (%p717) target = $region48
      $region47: #{feat_bottleneck_forward.1} parent=5 // pred_region
        %s720 = ssub.s32 %s16, 2
        // Predicated region
        $region49: #{feat_bottleneck_forward.1} parent=47 // pred_check
          %p721 = pneg %p113
        $region50: #{feat_bottleneck_forward.1} parent=47 // pred_check_branch
          %723 = sbr.rel (%p721) target = $region52
        $region51: #{feat_bottleneck_forward.1} parent=47 // pred_region
          %s724 = sand.u32 %s98, 1
          %s725 = scalar_lea.sflag [#allocation4], %s724
          %s726 = sand.u32 %s98, 1
          %s727 = smul.addr %s726, 8
          %s728 = scalar_lea.vmem [#allocation7], %s727
          %729 = dma.done %s725, 128
        $region52: #{feat_bottleneck_forward.1} parent=47 // pred_fallthru
          _
      $region48: #{feat_bottleneck_forward.1} parent=5 // pred_fallthru
        _
    $region6: #{feat_bottleneck_forward.1} parent=1 // loop_footer
      %s20 = sadd.s32 1, %s16
    $region7: #{feat_bottleneck_forward.1} parent=1 // loop_footer_branch
      %15 = sbr.rel target = $region3
    $region8: #{feat_bottleneck_forward.1} parent=1 // loop_exit
      _
    %730 = vsyncpa [#allocation3], 1
    %s731 = scalar_lea.sflag [#allocation3], 1
    %732 = vsyncpa %s731, 1
    %733 = vsyncpa [#allocation6], 1
    %734 = vsyncpa [#allocation4], 1
    %s735 = scalar_lea.sflag [#allocation4], 1
    %736 = vsyncpa %s735, 1

</llo_original>
